<compile_context>
chip_gen: v7x
topology: tpu7x:2x2x1
jax: 0.10.0
libtpu: 0.0.40
codegen_flags: <defaults>
</compile_context>

<pallas_src>
import math
import functools

import jax
import jax.numpy as jnp
from jax.experimental import pallas as pl
from jax.experimental.pallas import tpu as pltpu

DIM_INPUT = 16
FILTER_SIZE = 128
DIM_OUT = 3

_INV_SQRT2 = 1.0 / math.sqrt(2.0)


def _decoder_kernel(xt_ref, w1_ref, b1_ref, w2_ref, b2_ref, ot_ref):
    # xt_ref: (DIM_INPUT, TN)            -- rows of x on the lane axis
    # w1_ref: (FILTER_SIZE, DIM_INPUT)   -- PyTorch layout (out, in)
    # b1_ref: (FILTER_SIZE, 1)
    # w2_ref: (DIM_OUT, FILTER_SIZE)
    # b2_ref: (DIM_OUT, 1)
    # ot_ref: (DIM_OUT, TN)              -- lane-dense output slab
    xt = xt_ref[...]
    # h^T = W1 @ x^T + b1  -> (FILTER_SIZE, TN), f32 accumulation on the MXU.
    h = jnp.dot(w1_ref[...], xt, preferred_element_type=jnp.float32) + b1_ref[...]
    # Exact (erf-based) GELU, matching torch.nn.GELU() default.
    h = 0.5 * h * (1.0 + jax.lax.erf(h * jnp.float32(_INV_SQRT2)))
    # y^T = W2 @ h^T + b2  -> (DIM_OUT, TN)
    y = jnp.dot(w2_ref[...], h, preferred_element_type=jnp.float32) + b2_ref[...]
    ot_ref[...] = y.astype(ot_ref.dtype)


def _round_up(v, m):
    return ((v + m - 1) // m) * m


@functools.partial(jax.jit, static_argnames=("tn",))
def simple_decoder_forward(x, w1, b1, w2, b2, *, tn=4096):
    """x: (B, L, 16) f32; w1: (128,16); b1: (128,); w2: (3,128); b2: (3,).

    Returns (B, L, 3) f32, matching SimpleDecoder(dim_input=16, layer_size=1).
    """
    b, l, d = x.shape
    assert d == DIM_INPUT, d
    n = b * l

    # Lane-dense layout: rows of x become lanes (layout plumbing in the wrapper).
    xt = x.reshape(n, d).T                       # (DIM_INPUT, N)
    b1c = b1.reshape(FILTER_SIZE, 1)
    b2c = b2.reshape(DIM_OUT, 1)

    # Tile size along the lane (row) axis.
    if n >= 256:
        # Multiple of 128, and at least two grid steps so both v7x TensorCores
        # get work; the ragged last block is masked by Pallas (no jnp.pad).
        tn_eff = min(tn, _round_up(pl.cdiv(n, 2), 128))
    else:
        # Single block spanning the full (small) array: full-dim blocks are
        # exempt from the (8, 128) divisibility rule.
        tn_eff = n
    grid = (pl.cdiv(n, tn_eff),)

    # Advisory cost hint for XLA's scheduler around the custom call.
    flops = 2 * n * (DIM_INPUT * FILTER_SIZE + FILTER_SIZE * DIM_OUT) \
        + n * (FILTER_SIZE + DIM_OUT)
    bytes_accessed = 4 * (
        n * DIM_INPUT + n * DIM_OUT
        + FILTER_SIZE * DIM_INPUT + FILTER_SIZE
        + DIM_OUT * FILTER_SIZE + DIM_OUT)

    out_t = pl.pallas_call(
        _decoder_kernel,
        out_shape=jax.ShapeDtypeStruct((DIM_OUT, n), x.dtype),
        grid_spec=pltpu.PrefetchScalarGridSpec(
            num_scalar_prefetch=0,
            grid=grid,
            in_specs=[
                pl.BlockSpec((DIM_INPUT, tn_eff), lambda j: (0, j)),
                pl.BlockSpec((FILTER_SIZE, DIM_INPUT), lambda j: (0, 0)),
                pl.BlockSpec((FILTER_SIZE, 1), lambda j: (0, 0)),
                pl.BlockSpec((DIM_OUT, FILTER_SIZE), lambda j: (0, 0)),
                pl.BlockSpec((DIM_OUT, 1), lambda j: (0, 0)),
            ],
            out_specs=pl.BlockSpec((DIM_OUT, tn_eff), lambda j: (0, j)),
        ),
        compiler_params=pltpu.CompilerParams(
            dimension_semantics=("parallel",),
            vmem_limit_bytes=32 * 1024 * 1024,
        ),
        cost_estimate=pl.CostEstimate(
            flops=flops,
            transcendentals=n * FILTER_SIZE,      # one erf per hidden element
            bytes_accessed=bytes_accessed,
        ),
    )(xt, w1, b1c, w2, b2c)

    return out_t.T.reshape(b, l, DIM_OUT)


def init_params(key):
    """Deterministic init mimicking nn.Linear's default U(-1/sqrt(fan_in), 1/sqrt(fan_in)).

    Weights are stored in PyTorch layout: (out_features, in_features).
    """
    k1, k2, k3, k4 = jax.random.split(key, 4)
    bound1 = 1.0 / math.sqrt(DIM_INPUT)
    w1 = jax.random.uniform(k1, (FILTER_SIZE, DIM_INPUT), jnp.float32, -bound1, bound1)
    b1 = jax.random.uniform(k2, (FILTER_SIZE,), jnp.float32, -bound1, bound1)
    bound2 = 1.0 / math.sqrt(FILTER_SIZE)
    w2 = jax.random.uniform(k3, (DIM_OUT, FILTER_SIZE), jnp.float32, -bound2, bound2)
    b2 = jax.random.uniform(k4, (DIM_OUT,), jnp.float32, -bound2, bound2)
    return w1, b1, w2, b2


def reference_forward(x, w1, b1, w2, b2):
    h = x @ w1.T + b1
    h = jax.nn.gelu(h, approximate=False)
    return h @ w2.T + b2


if __name__ == "__main__":
    key = jax.random.PRNGKey(0)
    kx, kp, kx2 = jax.random.split(key, 3)

    w1, b1, w2, b2 = init_params(kp)

    # Small shape matching the PyTorch module's (B, L, dim_input) interface.
    B, L = 2, 8
    x = jax.random.normal(kx, (B, L, DIM_INPUT), jnp.float32)
    out = jax.block_until_ready(simple_decoder_forward(x, w1, b1, w2, b2))
    ref = reference_forward(x, w1, b1, w2, b2)
    assert out.shape == (B, L, DIM_OUT), out.shape
    assert jnp.allclose(out, ref, atol=1e-5, rtol=1e-5), float(jnp.abs(out - ref).max())

    # Larger shape exercising the multi-step grid + ragged last block path
    # (n = 4000 -> two 2048-wide lane tiles, second one ragged).
    B2, L2 = 4, 1000
    x2 = jax.random.normal(kx2, (B2, L2, DIM_INPUT), jnp.float32)
    out2 = jax.block_until_ready(simple_decoder_forward(x2, w1, b1, w2, b2))
    ref2 = reference_forward(x2, w1, b1, w2, b2)
    assert out2.shape == (B2, L2, DIM_OUT), out2.shape
    assert jnp.allclose(out2, ref2, atol=1e-5, rtol=1e-5), float(jnp.abs(out2 - ref2).max())

    print("KERNEL_OK")
</pallas_src>

<mosaic_0001>
module attributes {stable_mosaic.version = 11 : i64} {
  func.func @_decoder_kernel(%arg0: i32, %arg1: memref<16x16xf32, #tpu.memory_space<vmem>>, %arg2: memref<128x16xf32, #tpu.memory_space<vmem>>, %arg3: memref<128x1xf32, #tpu.memory_space<vmem>>, %arg4: memref<3x128xf32, #tpu.memory_space<vmem>>, %arg5: memref<3x1xf32, #tpu.memory_space<vmem>>, %arg6: memref<3x16xf32, #tpu.memory_space<vmem>>) attributes {dimension_semantics = [#tpu.dimension_semantics<parallel>], iteration_bounds = array<i64: 1>, scalar_prefetch = 0 : i64, scratch_operands = 0 : i64, tpu.core_type = #tpu.core_type<tc>, window_params = [{transform_indices = @transform_0, window_bounds = array<i64: 16, 16>}, {pipeline_mode = #tpu.pipeline_mode<synchronous>, transform_indices = @transform_1, window_bounds = array<i64: 128, 16>}, {pipeline_mode = #tpu.pipeline_mode<synchronous>, transform_indices = @transform_2, window_bounds = array<i64: 128, 1>}, {pipeline_mode = #tpu.pipeline_mode<synchronous>, transform_indices = @transform_3, window_bounds = array<i64: 3, 128>}, {pipeline_mode = #tpu.pipeline_mode<synchronous>, transform_indices = @transform_4, window_bounds = array<i64: 3, 1>}, {transform_indices = @transform_5, window_bounds = array<i64: 3, 16>}]} {
    %c0 = arith.constant 0 : index
    %c0_0 = arith.constant 0 : index
    %0 = vector.load %arg1[%c0, %c0_0] : memref<16x16xf32, #tpu.memory_space<vmem>>, vector<16x16xf32>
    %c0_1 = arith.constant 0 : index
    %c0_2 = arith.constant 0 : index
    %1 = vector.load %arg2[%c0_1, %c0_2] : memref<128x16xf32, #tpu.memory_space<vmem>>, vector<128x16xf32>
    %cst = arith.constant dense<0.000000e+00> : vector<128x16xf32>
    %2 = tpu.matmul %1, %0, %cst {dimension_numbers = #tpu.dot_dimension_numbers<[1], [0], [0], [1], [0, 0, 1, 1], [], []>} : vector<128x16xf32>, vector<16x16xf32>, vector<128x16xf32> -> vector<128x16xf32>
    %c0_3 = arith.constant 0 : index
    %c0_4 = arith.constant 0 : index
    %3 = vector.load %arg3[%c0_3, %c0_4] : memref<128x1xf32, #tpu.memory_space<vmem>>, vector<128x1xf32>
    %4 = vector.broadcast %3 : vector<128x1xf32> to vector<128x16xf32>
    %5 = arith.addf %2, %4 : vector<128x16xf32>
    %cst_5 = arith.constant 5.000000e-01 : f32
    %6 = vector.broadcast %cst_5 : f32 to vector<128x16xf32>
    %7 = arith.mulf %6, %5 : vector<128x16xf32>
    %cst_6 = arith.constant 0.707106769 : f32
    %8 = vector.broadcast %cst_6 : f32 to vector<128x16xf32>
    %9 = arith.mulf %5, %8 : vector<128x16xf32>
    %10 = math.erf %9 : vector<128x16xf32>
    %cst_7 = arith.constant 1.000000e+00 : f32
    %11 = vector.broadcast %cst_7 : f32 to vector<128x16xf32>
    %12 = arith.addf %11, %10 : vector<128x16xf32>
    %13 = arith.mulf %7, %12 : vector<128x16xf32>
    %c0_8 = arith.constant 0 : index
    %c0_9 = arith.constant 0 : index
    %14 = vector.load %arg4[%c0_8, %c0_9] : memref<3x128xf32, #tpu.memory_space<vmem>>, vector<3x128xf32>
    %cst_10 = arith.constant dense<0.000000e+00> : vector<3x16xf32>
    %15 = tpu.matmul %14, %13, %cst_10 {dimension_numbers = #tpu.dot_dimension_numbers<[1], [0], [0], [1], [0, 0, 1, 1], [], []>} : vector<3x128xf32>, vector<128x16xf32>, vector<3x16xf32> -> vector<3x16xf32>
    %c0_11 = arith.constant 0 : index
    %c0_12 = arith.constant 0 : index
    %16 = vector.load %arg5[%c0_11, %c0_12] : memref<3x1xf32, #tpu.memory_space<vmem>>, vector<3x1xf32>
    %17 = vector.broadcast %16 : vector<3x1xf32> to vector<3x16xf32>
    %18 = arith.addf %15, %17 : vector<3x16xf32>
    %c0_13 = arith.constant 0 : index
    %c0_14 = arith.constant 0 : index
    %19 = vector.load %arg6[%c0_13, %c0_14] : memref<3x16xf32, #tpu.memory_space<vmem>>, vector<3x16xf32>
    tpu.vector_store %arg6[%c0_13, %c0_14], %18 {strides = array<i32>} : memref<3x16xf32, #tpu.memory_space<vmem>>, vector<3x16xf32>,
    return
  }
  func.func @transform_0(%arg0: i32) -> (i32, i32) {
    %c0_i32 = arith.constant 0 : i32
    %c0_i32_0 = arith.constant 0 : i32
    return %c0_i32, %arg0 : i32, i32
  }
  func.func @transform_1(%arg0: i32) -> (i32, i32) {
    %c0_i32 = arith.constant 0 : i32
    %c0_i32_0 = arith.constant 0 : i32
    %c0_i32_1 = arith.constant 0 : i32
    return %c0_i32, %c0_i32_0 : i32, i32
  }
  func.func @transform_2(%arg0: i32) -> (i32, i32) {
    %c0_i32 = arith.constant 0 : i32
    %c0_i32_0 = arith.constant 0 : i32
    %c0_i32_1 = arith.constant 0 : i32
    return %c0_i32, %c0_i32_0 : i32, i32
  }
  func.func @transform_3(%arg0: i32) -> (i32, i32) {
    %c0_i32 = arith.constant 0 : i32
    %c0_i32_0 = arith.constant 0 : i32
    %c0_i32_1 = arith.constant 0 : i32
    return %c0_i32, %c0_i32_0 : i32, i32
  }
  func.func @transform_4(%arg0: i32) -> (i32, i32) {
    %c0_i32 = arith.constant 0 : i32
    %c0_i32_0 = arith.constant 0 : i32
    %c0_i32_1 = arith.constant 0 : i32
    return %c0_i32, %c0_i32_0 : i32, i32
  }
  func.func @transform_5(%arg0: i32) -> (i32, i32) {
    %c0_i32 = arith.constant 0 : i32
    %c0_i32_0 = arith.constant 0 : i32
    return %c0_i32, %arg0 : i32, i32
  }
}

</mosaic_0001>

<llo_original>
// kernel: simple_decoder_forward.1
$region0: #{simple_decoder_forward.1}
  #allocation0 [shape = 'u32[]', space=smem, size = 0x4, offset = 0x4, fixed_abs, tag = 'smem constant byte address 0x4 - core index']
  #allocation1 [shape = 'u32[144,128]{1,0:T(1,128)}', space=vmem, size = 0x12000, scoped, tag = 'internal scratch']
  %s0 = inlined_call_operand.vmem [shape: f32[16,16], index: 0, kind: input, shape index: {}]
  %s1 = inlined_call_operand.vmem [shape: f32[128,16], index: 1, kind: input, shape index: {}]
  %s2 = inlined_call_operand.vmem [shape: f32[128,1], index: 2, kind: input, shape index: {}]
  %s3 = inlined_call_operand.vmem [shape: f32[3,128], index: 3, kind: input, shape index: {}]
  %s4 = inlined_call_operand.vmem [shape: f32[3,1], index: 4, kind: input, shape index: {}]
  %s5 = inlined_call_operand.vmem [shape: f32[3,16], index: 5, kind: output, shape index: {}]
  %s6 = sld [smem:[#allocation0]]
  $region30: #{simple_decoder_forward.1} parent=0
    _
  %s8 = ssub.s32 1, %s6
  %s9 = scalar_select 0, %s8, %s6
  // Predicated region
  $region2: #{simple_decoder_forward.1} parent=0 // pred_check
    _
  $region3: #{simple_decoder_forward.1} parent=0 // pred_check_branch
    %11 = sbr.rel (0) target = $region5
  $region4: #{simple_decoder_forward.1} parent=0 // pred_region
    _
  $region5: #{simple_decoder_forward.1} parent=0 // pred_fallthru
    _
  // Predicated region
  $region6: #{simple_decoder_forward.1} parent=0 // pred_check
    _
  $region7: #{simple_decoder_forward.1} parent=0 // pred_check_branch
    %13 = sbr.rel (0) target = $region9
  $region8: #{simple_decoder_forward.1} parent=0 // pred_region
    _
  $region9: #{simple_decoder_forward.1} parent=0 // pred_fallthru
    _
  // Predicated region
  $region10: #{simple_decoder_forward.1} parent=0 // pred_check
    _
  $region11: #{simple_decoder_forward.1} parent=0 // pred_check_branch
    %15 = sbr.rel (0) target = $region13
  $region12: #{simple_decoder_forward.1} parent=0 // pred_region
    _
  $region13: #{simple_decoder_forward.1} parent=0 // pred_fallthru
    _
  // Predicated region
  $region14: #{simple_decoder_forward.1} parent=0 // pred_check
    _
  $region15: #{simple_decoder_forward.1} parent=0 // pred_check_branch
    %17 = sbr.rel (0) target = $region17
  $region16: #{simple_decoder_forward.1} parent=0 // pred_region
    _
  $region17: #{simple_decoder_forward.1} parent=0 // pred_fallthru
    _
  // Predicated region
  $region18: #{simple_decoder_forward.1} parent=0 // pred_check
    _
  $region19: #{simple_decoder_forward.1} parent=0 // pred_check_branch
    %19 = sbr.rel (0) target = $region21
  $region20: #{simple_decoder_forward.1} parent=0 // pred_region
    _
  $region21: #{simple_decoder_forward.1} parent=0 // pred_fallthru
    _
  %v20 = vld [vmem:[%s0] sm:$0xff]
  %v21 = vld [vmem:[%s0 + $0x8] sm:$0xff]
  %v22 = vld [vmem:[%s1] sm:$0xff]
  %v23 = vld [vmem:[%s1 + $0x8] sm:$0xff]
  %v24 = vld [vmem:[%s1 + $0x10] sm:$0xff]
  %v25 = vld [vmem:[%s1 + $0x18] sm:$0xff]
  %v26 = vld [vmem:[%s1 + $0x20] sm:$0xff]
  %v27 = vld [vmem:[%s1 + $0x28] sm:$0xff]
  %v28 = vld [vmem:[%s1 + $0x30] sm:$0xff]
  %v29 = vld [vmem:[%s1 + $0x38] sm:$0xff]
  %v30 = vld [vmem:[%s1 + $0x40] sm:$0xff]
  %v31 = vld [vmem:[%s1 + $0x48] sm:$0xff]
  %v32 = vld [vmem:[%s1 + $0x50] sm:$0xff]
  %v33 = vld [vmem:[%s1 + $0x58] sm:$0xff]
  %v34 = vld [vmem:[%s1 + $0x60] sm:$0xff]
  %v35 = vld [vmem:[%s1 + $0x68] sm:$0xff]
  %v36 = vld [vmem:[%s1 + $0x70] sm:$0xff]
  %v37 = vld [vmem:[%s1 + $0x78] sm:$0xff]
  %v38 = vld [vmem:[%s2] sm:$0xff]
  %v39 = vld [vmem:[%s2 + $0x8] sm:$0xff]
  %v40 = vld [vmem:[%s2 + $0x10] sm:$0xff]
  %v41 = vld [vmem:[%s2 + $0x18] sm:$0xff]
  %v42 = vld [vmem:[%s2 + $0x20] sm:$0xff]
  %v43 = vld [vmem:[%s2 + $0x28] sm:$0xff]
  %v44 = vld [vmem:[%s2 + $0x30] sm:$0xff]
  %v45 = vld [vmem:[%s2 + $0x38] sm:$0xff]
  %v46 = vld [vmem:[%s2 + $0x40] sm:$0xff]
  %v47 = vld [vmem:[%s2 + $0x48] sm:$0xff]
  %v48 = vld [vmem:[%s2 + $0x50] sm:$0xff]
  %v49 = vld [vmem:[%s2 + $0x58] sm:$0xff]
  %v50 = vld [vmem:[%s2 + $0x60] sm:$0xff]
  %v51 = vld [vmem:[%s2 + $0x68] sm:$0xff]
  %v52 = vld [vmem:[%s2 + $0x70] sm:$0xff]
  %v53 = vld [vmem:[%s2 + $0x78] sm:$0xff]
  %55 = vset.pattern.permute.xlu0 0
  %56 = vperm.xlu0 %55, %v38
  %v57 = vpop.permute.xlu0 %56
  %60 = vset.pattern.permute.xlu0 0
  %61 = vperm.xlu0 %60, %v39
  %v62 = vpop.permute.xlu0 %61
  %65 = vset.pattern.permute.xlu0 0
  %66 = vperm.xlu0 %65, %v40
  %v67 = vpop.permute.xlu0 %66
  %70 = vset.pattern.permute.xlu0 0
  %71 = vperm.xlu0 %70, %v41
  %v72 = vpop.permute.xlu0 %71
  %75 = vset.pattern.permute.xlu0 0
  %76 = vperm.xlu0 %75, %v42
  %v77 = vpop.permute.xlu0 %76
  %80 = vset.pattern.permute.xlu0 0
  %81 = vperm.xlu0 %80, %v43
  %v82 = vpop.permute.xlu0 %81
  %85 = vset.pattern.permute.xlu0 0
  %86 = vperm.xlu0 %85, %v44
  %v87 = vpop.permute.xlu0 %86
  %90 = vset.pattern.permute.xlu0 0
  %91 = vperm.xlu0 %90, %v45
  %v92 = vpop.permute.xlu0 %91
  %95 = vset.pattern.permute.xlu0 0
  %96 = vperm.xlu0 %95, %v46
  %v97 = vpop.permute.xlu0 %96
  %100 = vset.pattern.permute.xlu0 0
  %101 = vperm.xlu0 %100, %v47
  %v102 = vpop.permute.xlu0 %101
  %105 = vset.pattern.permute.xlu0 0
  %106 = vperm.xlu0 %105, %v48
  %v107 = vpop.permute.xlu0 %106
  %110 = vset.pattern.permute.xlu0 0
  %111 = vperm.xlu0 %110, %v49
  %v112 = vpop.permute.xlu0 %111
  %115 = vset.pattern.permute.xlu0 0
  %116 = vperm.xlu0 %115, %v50
  %v117 = vpop.permute.xlu0 %116
  %120 = vset.pattern.permute.xlu0 0
  %121 = vperm.xlu0 %120, %v51
  %v122 = vpop.permute.xlu0 %121
  %125 = vset.pattern.permute.xlu0 0
  %126 = vperm.xlu0 %125, %v52
  %v127 = vpop.permute.xlu0 %126
  %130 = vset.pattern.permute.xlu0 0
  %131 = vperm.xlu0 %130, %v53
  %v132 = vpop.permute.xlu0 %131
  %vm134 = vcmask 130048
  %v136 = vsel %vm134, %v22, 0
  %v139 = vsel %vm134, %v23, 0
  %v142 = vsel %vm134, %v24, 0
  %v145 = vsel %vm134, %v25, 0
  %v148 = vsel %vm134, %v26, 0
  %v151 = vsel %vm134, %v27, 0
  %v154 = vsel %vm134, %v28, 0
  %v157 = vsel %vm134, %v29, 0
  %v160 = vsel %vm134, %v30, 0
  %v163 = vsel %vm134, %v31, 0
  %v166 = vsel %vm134, %v32, 0
  %v169 = vsel %vm134, %v33, 0
  %v172 = vsel %vm134, %v34, 0
  %v175 = vsel %vm134, %v35, 0
  %v178 = vsel %vm134, %v36, 0
  %v181 = vsel %vm134, %v37, 0
  %183 = vmatprep.subr.mxu0 0.0
  %184 = vmatpush1.msra.mxu0 %v20
  %185 = vmatprep.subr.mxu0 0.0
  %186 = vmatpush1.msra.mxu0 %v21
  %187 = vmatprep.subr.mxu0 0.0
  %188 = vmatpush1.msra.mxu0 0.0
  %189 = vmatprep.subr.mxu0 0.0
  %190 = vmatpush1.msra.mxu0 0.0
  %191 = vmatprep.subr.mxu0 0.0
  %192 = vmatpush1.msra.mxu0 0.0
  %193 = vmatprep.subr.mxu0 0.0
  %194 = vmatpush1.msra.mxu0 0.0
  %195 = vmatprep.subr.mxu0 0.0
  %196 = vmatpush1.msra.mxu0 0.0
  %197 = vmatprep.subr.mxu0 0.0
  %198 = vmatpush1.msra.mxu0 0.0
  %199 = vmatprep.subr.mxu0 0.0
  %200 = vmatpush1.msra.mxu0 0.0
  %201 = vmatprep.subr.mxu0 0.0
  %202 = vmatpush1.msra.mxu0 0.0
  %203 = vmatprep.subr.mxu0 0.0
  %204 = vmatpush1.msra.mxu0 0.0
  %205 = vmatprep.subr.mxu0 0.0
  %206 = vmatpush1.msra.mxu0 0.0
  %207 = vmatprep.subr.mxu0 0.0
  %208 = vmatpush1.msra.mxu0 0.0
  %209 = vmatprep.subr.mxu0 0.0
  %210 = vmatpush1.msra.mxu0 0.0
  %211 = vmatprep.subr.mxu0 0.0
  %212 = vmatpush1.msra.mxu0 0.0
  %213 = vmatprep.subr.mxu0 0.0
  %214 = vmatpush1.msra.mxu0 0.0
  %215 = vmatprep.subr.mxu0 0.0
  %216 = vmatpush1.msra.mxu0 0.0
  %217 = vmatprep.subr.mxu0 0.0
  %218 = vmatpush1.msra.mxu0 0.0
  %219 = vmatprep.subr.mxu0 0.0
  %220 = vmatpush1.msra.mxu0 0.0
  %221 = vmatprep.subr.mxu0 0.0
  %222 = vmatpush1.msra.mxu0 0.0
  %223 = vmatprep.subr.mxu0 0.0
  %224 = vmatpush1.msra.mxu0 0.0
  %225 = vmatprep.subr.mxu0 0.0
  %226 = vmatpush1.msra.mxu0 0.0
  %227 = vmatprep.subr.mxu0 0.0
  %228 = vmatpush1.msra.mxu0 0.0
  %229 = vmatprep.subr.mxu0 0.0
  %230 = vmatpush1.msra.mxu0 0.0
  %231 = vmatprep.subr.mxu0 0.0
  %232 = vmatpush1.msra.mxu0 0.0
  %233 = vmatprep.subr.mxu0 0.0
  %234 = vmatpush1.msra.mxu0 0.0
  %235 = vmatprep.subr.mxu0 0.0
  %236 = vmatpush1.msra.mxu0 0.0
  %237 = vmatprep.subr.mxu0 0.0
  %238 = vmatpush1.msra.mxu0 0.0
  %239 = vmatprep.subr.mxu0 0.0
  %240 = vmatpush1.msra.mxu0 0.0
  %241 = vmatprep.subr.mxu0 0.0
  %242 = vmatpush1.msra.mxu0 0.0
  %243 = vmatprep.subr.mxu0 0.0
  %244 = vmatpush1.msra.mxu0 0.0
  %245 = vmatprep.subr.mxu0 0.0
  %246 = vmatpush1.msra.mxu0 0.0
  %247 = vmatprep.mubr.f32.mxu0 0.0
  %248 = vmatmul.mubr.f32.gmra.mrb[0].mxu0 %v136
  %v249 = vpop.f32.mrb[0].mxu0
  %v250 = vadd.f32 %v57, %v249
  %v251 = vpop.f32.mrb[0].mxu0
  %252 = vmatprep.mubr.f32.mxu0 0.0
  %253 = vmatmul.mubr.f32.gmra.mrb[0].mxu0 %v139
  %v254 = vpop.f32.mrb[0].mxu0
  %v255 = vadd.f32 %v62, %v254
  %v256 = vpop.f32.mrb[0].mxu0
  %257 = vmatprep.mubr.f32.mxu0 0.0
  %258 = vmatmul.mubr.f32.gmra.mrb[0].mxu0 %v142
  %v259 = vpop.f32.mrb[0].mxu0
  %v260 = vadd.f32 %v67, %v259
  %v261 = vpop.f32.mrb[0].mxu0
  %262 = vmatprep.mubr.f32.mxu0 0.0
  %263 = vmatmul.mubr.f32.gmra.mrb[0].mxu0 %v145
  %v264 = vpop.f32.mrb[0].mxu0
  %v265 = vadd.f32 %v72, %v264
  %v266 = vpop.f32.mrb[0].mxu0
  %267 = vmatprep.mubr.f32.mxu0 0.0
  %268 = vmatmul.mubr.f32.gmra.mrb[0].mxu0 %v148
  %v269 = vpop.f32.mrb[0].mxu0
  %v270 = vadd.f32 %v77, %v269
  %v271 = vpop.f32.mrb[0].mxu0
  %272 = vmatprep.mubr.f32.mxu0 0.0
  %273 = vmatmul.mubr.f32.gmra.mrb[0].mxu0 %v151
  %v274 = vpop.f32.mrb[0].mxu0
  %v275 = vadd.f32 %v82, %v274
  %v276 = vpop.f32.mrb[0].mxu0
  %277 = vmatprep.mubr.f32.mxu0 0.0
  %278 = vmatmul.mubr.f32.gmra.mrb[0].mxu0 %v154
  %v279 = vpop.f32.mrb[0].mxu0
  %v280 = vadd.f32 %v87, %v279
  %v281 = vpop.f32.mrb[0].mxu0
  %282 = vmatprep.mubr.f32.mxu0 0.0
  %283 = vmatmul.mubr.f32.gmra.mrb[0].mxu0 %v157
  %v284 = vpop.f32.mrb[0].mxu0
  %v285 = vadd.f32 %v92, %v284
  %v286 = vpop.f32.mrb[0].mxu0
  %287 = vmatprep.mubr.f32.mxu0 0.0
  %288 = vmatmul.mubr.f32.gmra.mrb[0].mxu0 %v160
  %v289 = vpop.f32.mrb[0].mxu0
  %v290 = vadd.f32 %v97, %v289
  %v291 = vpop.f32.mrb[0].mxu0
  %292 = vmatprep.mubr.f32.mxu0 0.0
  %293 = vmatmul.mubr.f32.gmra.mrb[0].mxu0 %v163
  %v294 = vpop.f32.mrb[0].mxu0
  %v295 = vadd.f32 %v102, %v294
  %v296 = vpop.f32.mrb[0].mxu0
  %297 = vmatprep.mubr.f32.mxu0 0.0
  %298 = vmatmul.mubr.f32.gmra.mrb[0].mxu0 %v166
  %v299 = vpop.f32.mrb[0].mxu0
  %v300 = vadd.f32 %v107, %v299
  %v301 = vpop.f32.mrb[0].mxu0
  %302 = vmatprep.mubr.f32.mxu0 0.0
  %303 = vmatmul.mubr.f32.gmra.mrb[0].mxu0 %v169
  %v304 = vpop.f32.mrb[0].mxu0
  %v305 = vadd.f32 %v112, %v304
  %v306 = vpop.f32.mrb[0].mxu0
  %307 = vmatprep.mubr.f32.mxu0 0.0
  %308 = vmatmul.mubr.f32.gmra.mrb[0].mxu0 %v172
  %v309 = vpop.f32.mrb[0].mxu0
  %v310 = vadd.f32 %v117, %v309
  %v311 = vpop.f32.mrb[0].mxu0
  %312 = vmatprep.mubr.f32.mxu0 0.0
  %313 = vmatmul.mubr.f32.gmra.mrb[0].mxu0 %v175
  %v314 = vpop.f32.mrb[0].mxu0
  %v315 = vadd.f32 %v122, %v314
  %v316 = vpop.f32.mrb[0].mxu0
  %317 = vmatprep.mubr.f32.mxu0 0.0
  %318 = vmatmul.mubr.f32.gmra.mrb[0].mxu0 %v178
  %v319 = vpop.f32.mrb[0].mxu0
  %v320 = vadd.f32 %v127, %v319
  %v321 = vpop.f32.mrb[0].mxu0
  %322 = vmatprep.mubr.f32.mxu0 0.0
  %323 = vmatmul.mubr.f32.gmra.mrb[0].mxu0 %v181
  %v324 = vpop.f32.mrb[0].mxu0
  %v325 = vadd.f32 %v132, %v324
  %v326 = vpop.f32.mrb[0].mxu0
  %327 = vdwg.mxu0
  %v328 = vmul.f32 %v250, 0.5
  %v329 = vmul.f32 %v255, 0.5
  %v330 = vmul.f32 %v260, 0.5
  %v331 = vmul.f32 %v265, 0.5
  %v332 = vmul.f32 %v270, 0.5
  %v333 = vmul.f32 %v275, 0.5
  %v334 = vmul.f32 %v280, 0.5
  %v335 = vmul.f32 %v285, 0.5
  %v336 = vmul.f32 %v290, 0.5
  %v337 = vmul.f32 %v295, 0.5
  %v338 = vmul.f32 %v300, 0.5
  %v339 = vmul.f32 %v305, 0.5
  %v340 = vmul.f32 %v310, 0.5
  %v341 = vmul.f32 %v315, 0.5
  %v342 = vmul.f32 %v320, 0.5
  %v343 = vmul.f32 %v325, 0.5
  %v344 = vmul.f32 %v250, 0.70710677
  %v345 = vmul.f32 %v255, 0.70710677
  %v346 = vmul.f32 %v260, 0.70710677
  %v347 = vmul.f32 %v265, 0.70710677
  %v348 = vmul.f32 %v270, 0.70710677
  %v349 = vmul.f32 %v275, 0.70710677
  %v350 = vmul.f32 %v280, 0.70710677
  %v351 = vmul.f32 %v285, 0.70710677
  %v352 = vmul.f32 %v290, 0.70710677
  %v353 = vmul.f32 %v295, 0.70710677
  %v354 = vmul.f32 %v300, 0.70710677
  %v355 = vmul.f32 %v305, 0.70710677
  %v356 = vmul.f32 %v310, 0.70710677
  %v357 = vmul.f32 %v315, 0.70710677
  %v358 = vmul.f32 %v320, 0.70710677
  %v359 = vmul.f32 %v325, 0.70710677
  %v360 = verf.f32.pop %v344
  %v361 = verf.f32.pop %v345
  %v362 = verf.f32.pop %v346
  %v363 = verf.f32.pop %v347
  %v364 = verf.f32.pop %v348
  %v365 = verf.f32.pop %v349
  %v366 = verf.f32.pop %v350
  %v367 = verf.f32.pop %v351
  %v368 = verf.f32.pop %v352
  %v369 = verf.f32.pop %v353
  %v370 = verf.f32.pop %v354
  %v371 = verf.f32.pop %v355
  %v372 = verf.f32.pop %v356
  %v373 = verf.f32.pop %v357
  %v374 = verf.f32.pop %v358
  %v375 = verf.f32.pop %v359
  %v376 = vadd.f32 %v360, 1.0
  %v377 = vadd.f32 %v361, 1.0
  %v378 = vadd.f32 %v362, 1.0
  %v379 = vadd.f32 %v363, 1.0
  %v380 = vadd.f32 %v364, 1.0
  %v381 = vadd.f32 %v365, 1.0
  %v382 = vadd.f32 %v366, 1.0
  %v383 = vadd.f32 %v367, 1.0
  %v384 = vadd.f32 %v368, 1.0
  %v385 = vadd.f32 %v369, 1.0
  %v386 = vadd.f32 %v370, 1.0
  %v387 = vadd.f32 %v371, 1.0
  %v388 = vadd.f32 %v372, 1.0
  %v389 = vadd.f32 %v373, 1.0
  %v390 = vadd.f32 %v374, 1.0
  %v391 = vadd.f32 %v375, 1.0
  %v392 = vmul.f32 %v328, %v376
  %v393 = vmul.f32 %v329, %v377
  %v394 = vmul.f32 %v330, %v378
  %v395 = vmul.f32 %v331, %v379
  %v396 = vmul.f32 %v332, %v380
  %v397 = vmul.f32 %v333, %v381
  %v398 = vmul.f32 %v334, %v382
  %v399 = vmul.f32 %v335, %v383
  %v400 = vmul.f32 %v336, %v384
  %v401 = vmul.f32 %v337, %v385
  %v402 = vmul.f32 %v338, %v386
  %v403 = vmul.f32 %v339, %v387
  %v404 = vmul.f32 %v340, %v388
  %v405 = vmul.f32 %v341, %v389
  %v406 = vmul.f32 %v342, %v390
  %v407 = vmul.f32 %v343, %v391
  %v408 = vld [vmem:[%s3] sm:$0x7]
  %v409 = vld [vmem:[%s4] sm:$0x7]
  %411 = vset.pattern.permute.xlu0 0
  %412 = vperm.xlu0 %411, %v409
  %v413 = vpop.permute.xlu0 %412
  %415 = vmatprep.subr.mxu0 0.0
  %416 = vmatpush1.msra.mxu0 %v392
  %417 = vmatprep.subr.mxu0 0.0
  %418 = vmatpush1.msra.mxu0 %v393
  %419 = vmatprep.subr.mxu0 0.0
  %420 = vmatpush1.msra.mxu0 %v394
  %421 = vmatprep.subr.mxu0 0.0
  %422 = vmatpush1.msra.mxu0 %v395
  %423 = vmatprep.subr.mxu0 0.0
  %424 = vmatpush1.msra.mxu0 %v396
  %425 = vmatprep.subr.mxu0 0.0
  %426 = vmatpush1.msra.mxu0 %v397
  %427 = vmatprep.subr.mxu0 0.0
  %428 = vmatpush1.msra.mxu0 %v398
  %429 = vmatprep.subr.mxu0 0.0
  %430 = vmatpush1.msra.mxu0 %v399
  %431 = vmatprep.subr.mxu0 0.0
  %432 = vmatpush1.msra.mxu0 %v400
  %433 = vmatprep.subr.mxu0 0.0
  %434 = vmatpush1.msra.mxu0 %v401
  %435 = vmatprep.subr.mxu0 0.0
  %436 = vmatpush1.msra.mxu0 %v402
  %437 = vmatprep.subr.mxu0 0.0
  %438 = vmatpush1.msra.mxu0 %v403
  %439 = vmatprep.subr.mxu0 0.0
  %440 = vmatpush1.msra.mxu0 %v404
  %441 = vmatprep.subr.mxu0 0.0
  %442 = vmatpush1.msra.mxu0 %v405
  %443 = vmatprep.subr.mxu0 0.0
  %444 = vmatpush1.msra.mxu0 %v406
  %445 = vmatprep.subr.mxu0 0.0
  %446 = vmatpush1.msra.mxu0 %v407
  %447 = vmatprep.subr.mxu0 0.0
  %448 = vmatpush1.msra.mxu0 0.0
  %449 = vmatprep.subr.mxu0 0.0
  %450 = vmatpush1.msra.mxu0 0.0
  %451 = vmatprep.subr.mxu0 0.0
  %452 = vmatpush1.msra.mxu0 0.0
  %453 = vmatprep.subr.mxu0 0.0
  %454 = vmatpush1.msra.mxu0 0.0
  %455 = vmatprep.subr.mxu0 0.0
  %456 = vmatpush1.msra.mxu0 0.0
  %457 = vmatprep.subr.mxu0 0.0
  %458 = vmatpush1.msra.mxu0 0.0
  %459 = vmatprep.subr.mxu0 0.0
  %460 = vmatpush1.msra.mxu0 0.0
  %461 = vmatprep.subr.mxu0 0.0
  %462 = vmatpush1.msra.mxu0 0.0
  %463 = vmatprep.subr.mxu0 0.0
  %464 = vmatpush1.msra.mxu0 0.0
  %465 = vmatprep.subr.mxu0 0.0
  %466 = vmatpush1.msra.mxu0 0.0
  %467 = vmatprep.subr.mxu0 0.0
  %468 = vmatpush1.msra.mxu0 0.0
  %469 = vmatprep.subr.mxu0 0.0
  %470 = vmatpush1.msra.mxu0 0.0
  %471 = vmatprep.subr.mxu0 0.0
  %472 = vmatpush1.msra.mxu0 0.0
  %473 = vmatprep.subr.mxu0 0.0
  %474 = vmatpush1.msra.mxu0 0.0
  %475 = vmatprep.subr.mxu0 0.0
  %476 = vmatpush1.msra.mxu0 0.0
  %477 = vmatprep.subr.mxu0 0.0
  %478 = vmatpush1.msra.mxu0 0.0
  %479 = vmatprep.mubr.f32.mxu0 0.0
  %480 = vmatmul.mubr.f32.gmra.mrb[0].mxu0 %v408
  %v481 = vpop.f32.mrb[0].mxu0
  %v482 = vadd.f32 %v413, %v481
  %v483 = vpop.f32.mrb[0].mxu0
  %484 = vdwg.mxu0
  %vm485 = vcmask 124928
  %486 = vst.msk [vmem:[%s5] sm:$0x7] %vm485, %v482
  // Predicated region
  $region22: #{simple_decoder_forward.1} parent=0 // pred_check
    _
  $region23: #{simple_decoder_forward.1} parent=0 // pred_check_branch
    %488 = sbr.rel (0) target = $region25
  $region24: #{simple_decoder_forward.1} parent=0 // pred_region
    _
  $region25: #{simple_decoder_forward.1} parent=0 // pred_fallthru
    _
  // Predicated region
  $region26: #{simple_decoder_forward.1} parent=0 // pred_check
    _
  $region27: #{simple_decoder_forward.1} parent=0 // pred_check_branch
    %490 = sbr.rel (0) target = $region29
  $region28: #{simple_decoder_forward.1} parent=0 // pred_region
    _
  $region29: #{simple_decoder_forward.1} parent=0 // pred_fallthru
    _

</llo_original>
